<compile_context>
chip_gen: v7x
topology: tpu7x:2x2x1
jax: 0.10.0
libtpu: 0.0.40
codegen_flags: <defaults>
</compile_context>

<pallas_src>
import functools
import math

import jax
import jax.numpy as jnp
from jax.experimental import pallas as pl
from jax.experimental.pallas import tpu as pltpu

_C1 = math.sqrt(2.0 / math.pi)              # sqrt(2/pi)
_C2 = math.sqrt(2.0 / math.pi) * 0.044715   # sqrt(2/pi) * 0.044715
_LANE = 128
_MIB = 1024 * 1024


def _gelu_kernel(x_ref, o_ref, *, compute_dtype):
    # inner = x*(C1 + C2*x^2) == sqrt(2/pi)*(x + 0.044715*x^3) exactly.
    x = x_ref[...].astype(compute_dtype)
    inner = x * (_C1 + _C2 * (x * x))
    y = (0.5 * x) * (1.0 + jnp.tanh(inner))          # tanh -> EUP slot
    o_ref[...] = y.astype(o_ref.dtype)


def _gelu_xla(x):
    """Plain-XLA GeLU (used for the <128-element tail and as reference)."""
    xf = x.astype(jnp.float32)
    y = 0.5 * xf * (1.0 + jnp.tanh(_C1 * xf + _C2 * xf * xf * xf))
    return y.astype(x.dtype)


def _chip_config():
    """Generation-dependent tile size / VMEM limit / compute-dtype policy."""
    try:
        kind = jax.devices()[0].device_kind.lower()
    except Exception:
        kind = ""
    if "7x" in kind or "v7" in kind:
        # v7x: 64 MiB physical VMEM, ~3.2 TB/s HBM, 2 TensorCores/chip.
        return dict(tile_bytes=8 * _MIB, vmem_limit=48 * _MIB,
                    bf16_compute=True, min_grid=2)
    if "v6" in kind:
        # v6e: 128 MiB VMEM, ~1.4 TB/s HBM, bf16-capable VPU/EUP.
        return dict(tile_bytes=8 * _MIB, vmem_limit=64 * _MIB,
                    bf16_compute=True, min_grid=1)
    # v5e and older / unknown: no bf16 VPU/EUP, ~0.8 TB/s HBM.
    return dict(tile_bytes=4 * _MIB, vmem_limit=48 * _MIB,
                bf16_compute=False, min_grid=1)


def _choose_factorization(total):
    """(rows, cols): widest cols (multiple of 128) dividing total, preferring
    rows % 8 == 0 so blocks are sublane-dense."""
    divisors = [c for c in (4096, 2048, 1024, 512, 256, 128) if total % c == 0]
    if not divisors:
        return None
    for c in divisors:
        if (total // c) % 8 == 0:
            return total // c, c
    c = divisors[0]
    return total // c, c


def _gelu_2d(x2, cfg):
    rows, cols = x2.shape
    dtype = x2.dtype
    itemsize = jnp.dtype(dtype).itemsize
    compute_dtype = (jnp.bfloat16
                     if (cfg["bf16_compute"] and dtype == jnp.bfloat16)
                     else jnp.float32)

    # Tile sizing: ~tile_bytes per input block; auto-pipeliner double-buffers
    # in + out => ~4x tile resident, comfortably under vmem_limit.
    tile_rows = max(8, cfg["tile_bytes"] // max(1, cols * itemsize))
    tile_rows = min(tile_rows, rows)
    if cfg["min_grid"] > 1 and rows >= 8 * cfg["min_grid"]:
        # Guarantee >= min_grid steps so both TensorCores (v7x) get work.
        tile_rows = min(tile_rows, pl.cdiv(rows, cfg["min_grid"]))
    if rows >= 8:
        tile_rows = max(8, (tile_rows // 8) * 8)
        if rows % tile_rows != 0 and rows % 8 == 0:
            # Prefer a tile height dividing rows: every block full -> all
            # stores unmasked, no padded trailing DMA.
            for cand in range(tile_rows, max(8, tile_rows // 2) - 1, -8):
                if rows % cand == 0:
                    tile_rows = cand
                    break
    else:
        tile_rows = rows
    n_tiles = pl.cdiv(rows, tile_rows)

    total = rows * cols
    cost = pl.CostEstimate(
        flops=8 * total,
        transcendentals=total,
        bytes_accessed=2 * total * itemsize,
    )

    kernel = functools.partial(_gelu_kernel, compute_dtype=compute_dtype)
    return pl.pallas_call(
        kernel,
        out_shape=jax.ShapeDtypeStruct((rows, cols), dtype),
        grid_spec=pltpu.PrefetchScalarGridSpec(
            num_scalar_prefetch=0,
            grid=(n_tiles,),
            in_specs=[pl.BlockSpec((tile_rows, cols), lambda i: (i, 0))],
            out_specs=pl.BlockSpec((tile_rows, cols), lambda i: (i, 0)),
        ),
        compiler_params=pltpu.CompilerParams(
            dimension_semantics=("parallel",),
            vmem_limit_bytes=cfg["vmem_limit"],
        ),
        cost_estimate=cost,
    )(x2)


def gelu_pallas(x):
    """Tanh-approximation GeLU, elementwise, via a Pallas TPU kernel."""
    orig_shape = x.shape
    total = x.size
    if total == 0:
        return x
    cfg = _chip_config()

    fact = _choose_factorization(total)
    if fact is not None:
        rows, cols = fact
        return _gelu_2d(x.reshape(rows, cols), cfg).reshape(orig_shape)

    # Rare path: element count not a multiple of 128.  Run the 128-aligned
    # prefix through the Pallas fast path, the <128-element tail in plain XLA.
    # TODO(synk): fold the tail into the kernel with a masked pltpu.store on
    # the last block to avoid the concatenate copy entirely.
    flat = x.reshape(-1)
    aligned = (total // _LANE) * _LANE
    tail = _gelu_xla(flat[aligned:])
    if aligned == 0:
        return tail.reshape(orig_shape)
    rows, cols = _choose_factorization(aligned)
    head = _gelu_2d(flat[:aligned].reshape(rows, cols), cfg).reshape(-1)
    return jnp.concatenate([head, tail]).reshape(orig_shape)


if __name__ == "__main__":
    key = jax.random.PRNGKey(0)
    # Small shape consistent with a generic activation input (e.g. NCHW).
    x = jax.random.normal(key, (2, 4, 16, 16), dtype=jnp.float32)

    out = jax.block_until_ready(gelu_pallas(x))

    ref = _gelu_xla(x)
    assert out.shape == x.shape
    assert out.dtype == x.dtype
    assert jnp.allclose(out, ref, atol=1e-5, rtol=1e-5), "mismatch vs reference"

    print("KERNEL_OK")
</pallas_src>

<mosaic_0001>
module attributes {stable_mosaic.version = 11 : i64} {
  func.func @_gelu_kernel(%arg0: i32, %arg1: memref<8x256xf32, #tpu.memory_space<vmem>>, %arg2: memref<8x256xf32, #tpu.memory_space<vmem>>) attributes {dimension_semantics = [#tpu.dimension_semantics<parallel>], iteration_bounds = array<i64: 1>, scalar_prefetch = 0 : i64, scratch_operands = 0 : i64, tpu.core_type = #tpu.core_type<tc>, window_params = [{transform_indices = @transform_0, window_bounds = array<i64: 8, 256>}, {transform_indices = @transform_1, window_bounds = array<i64: 8, 256>}]} {
    %c0 = arith.constant 0 : index
    %c0_0 = arith.constant 0 : index
    %0 = vector.load %arg1[%c0, %c0_0] : memref<8x256xf32, #tpu.memory_space<vmem>>, vector<8x256xf32>
    %1 = arith.mulf %0, %0 : vector<8x256xf32>
    %cst = arith.constant 0.0356774069 : f32
    %2 = vector.broadcast %cst : f32 to vector<8x256xf32>
    %3 = arith.mulf %2, %1 : vector<8x256xf32>
    %cst_1 = arith.constant 0.797884583 : f32
    %4 = vector.broadcast %cst_1 : f32 to vector<8x256xf32>
    %5 = arith.addf %4, %3 : vector<8x256xf32>
    %6 = arith.mulf %0, %5 : vector<8x256xf32>
    %cst_2 = arith.constant 5.000000e-01 : f32
    %7 = vector.broadcast %cst_2 : f32 to vector<8x256xf32>
    %8 = arith.mulf %7, %0 : vector<8x256xf32>
    %9 = math.tanh %6 : vector<8x256xf32>
    %cst_3 = arith.constant 1.000000e+00 : f32
    %10 = vector.broadcast %cst_3 : f32 to vector<8x256xf32>
    %11 = arith.addf %10, %9 : vector<8x256xf32>
    %12 = arith.mulf %8, %11 : vector<8x256xf32>
    %c0_4 = arith.constant 0 : index
    %c0_5 = arith.constant 0 : index
    %13 = vector.load %arg2[%c0_4, %c0_5] : memref<8x256xf32, #tpu.memory_space<vmem>>, vector<8x256xf32>
    tpu.vector_store %arg2[%c0_4, %c0_5], %12 {strides = array<i32>} : memref<8x256xf32, #tpu.memory_space<vmem>>, vector<8x256xf32>,
    return
  }
  func.func @transform_0(%arg0: i32) -> (i32, i32) {
    %c0_i32 = arith.constant 0 : i32
    %c0_i32_0 = arith.constant 0 : i32
    return %arg0, %c0_i32 : i32, i32
  }
  func.func @transform_1(%arg0: i32) -> (i32, i32) {
    %c0_i32 = arith.constant 0 : i32
    %c0_i32_0 = arith.constant 0 : i32
    return %arg0, %c0_i32 : i32, i32
  }
}

</mosaic_0001>

<llo_original>
// kernel: tpu_custom_call.1
$region0: #{tpu_custom_call.1}
  #allocation0 [shape = 'u32[]', space=smem, size = 0x4, offset = 0x4, fixed_abs, tag = 'smem constant byte address 0x4 - core index']
  #allocation1 [shape = 'u32[144,128]{1,0:T(1,128)}', space=vmem, size = 0x12000, scoped, tag = 'internal scratch']
  %s0 = inlined_call_operand.hbm [shape: f32[8,256], index: 0, kind: input, shape index: {}]
  %s1 = inlined_call_operand.hbm [shape: f32[8,256], index: 1, kind: output, shape index: {}]
  %s2 = sld [smem:[#allocation0]]
  $region18: #{tpu_custom_call.1} parent=0
    _
  %s4 = ssub.s32 1, %s2
  %s5 = scalar_select 0, %s4, %s2
  $region1: #{tpu_custom_call.1} parent=0
    #allocation2 [shape = 'u8[8192]{0}', space=vmem, size = 0x2000, scoped, tag = 'input window, operand 0, single buffered']
    #allocation3 [shape = 's32[1]{0}', space=sflag, size = 0x4, scoped, tag = 'scoped memory for tpu_custom_call.1']
    #allocation4 [shape = 's32[1]{0}', space=sflag, size = 0x4, scoped, tag = 'scoped memory for tpu_custom_call.1']
    #allocation5 [shape = 'u8[8192]{0}', space=vmem, size = 0x2000, scoped, tag = 'output window, operand 0, single buffered']
    %6 = vsyncpa [#allocation3], 0
    %7 = vsyncpa [#allocation4], 0
    // Predicated region
    $region2: #{tpu_custom_call.1} parent=1 // pred_check
      _
    $region3: #{tpu_custom_call.1} parent=1 // pred_check_branch
      %9 = sbr.rel (0) target = $region5
    $region4: #{tpu_custom_call.1} parent=1 // pred_region
      %s11 = ssub.s32 256, 256
      %12 = vsyncadd [#allocation3], %s11
      %s14 = sshll.u32 [#allocation2], 4
      %s15 = int_to_ptr.vmem [resolvable:$true] %s14
      %17 = dma.hbm_to_vmem [thread:$0]  %s0, 256, %s15, [#allocation3]
    $region5: #{tpu_custom_call.1} parent=1 // pred_fallthru
      _
    // Predicated region
    $region6: #{tpu_custom_call.1} parent=1 // pred_check
      _
    $region7: #{tpu_custom_call.1} parent=1 // pred_check_branch
      %19 = sbr.rel (0) target = $region9
    $region8: #{tpu_custom_call.1} parent=1 // pred_region
      %20 = dma.done [#allocation3], 256
    $region9: #{tpu_custom_call.1} parent=1 // pred_fallthru
      _
    %v21 = vld [vmem:[#allocation2] sm:$0xff]
    %v22 = vld [vmem:[#allocation2 + $0x8] sm:$0xff]
    %v23 = vmul.f32 %v21, %v21
    %v24 = vmul.f32 %v22, %v22
    %v25 = vmul.f32 %v23, 0.035677407
    %v26 = vmul.f32 %v24, 0.035677407
    %v27 = vadd.f32 %v25, 0.7978846
    %v28 = vadd.f32 %v26, 0.7978846
    %v29 = vmul.f32 %v21, %v27
    %v30 = vmul.f32 %v22, %v28
    %v31 = vmul.f32 %v21, 0.5
    %v32 = vmul.f32 %v22, 0.5
    %v33 = vtanh.pop %v29
    %v34 = vtanh.pop %v30
    %v35 = vadd.f32 %v33, 1.0
    %v36 = vadd.f32 %v34, 1.0
    %v37 = vmul.f32 %v31, %v35
    %v38 = vmul.f32 %v32, %v36
    %39 = vst [vmem:[#allocation5] sm:$0xff] %v37
    %40 = vst [vmem:[#allocation5 + $0x8] sm:$0xff] %v38
    // Predicated region
    $region10: #{tpu_custom_call.1} parent=1 // pred_check
      _
    $region11: #{tpu_custom_call.1} parent=1 // pred_check_branch
      %42 = sbr.rel (0) target = $region13
    $region12: #{tpu_custom_call.1} parent=1 // pred_region
      %s44 = ssub.s32 256, 256
      %45 = vsyncadd [#allocation4], %s44
      %s47 = sshll.u32 [#allocation5], 4
      %s48 = int_to_ptr.vmem [resolvable:$true] %s47
      %50 = dma.vmem_to_hbm [thread:$0]  %s48, 256, %s1, [#allocation4]
    $region13: #{tpu_custom_call.1} parent=1 // pred_fallthru
      _
    // Predicated region
    $region14: #{tpu_custom_call.1} parent=1 // pred_check
      _
    $region15: #{tpu_custom_call.1} parent=1 // pred_check_branch
      %52 = sbr.rel (0) target = $region17
    $region16: #{tpu_custom_call.1} parent=1 // pred_region
      %53 = dma.done [#allocation4], 256
    $region17: #{tpu_custom_call.1} parent=1 // pred_fallthru
      _
    %54 = vsyncpa [#allocation3], 1
    %55 = vsyncpa [#allocation4], 1

</llo_original>
